<compile_context>
chip_gen: v6e
topology: v6e:2x2x1
jax: 0.10.0
libtpu: 0.0.40
codegen_flags: <defaults>
</compile_context>

<pallas_src>
import functools

import jax
import jax.numpy as jnp
from jax.experimental import pallas as pl
from jax.experimental.pallas import tpu as pltpu


def _ce_partial_kernel(logits_ref, labels_ref, out_ref, *, tn, n_valid):
    x = logits_ref[...]                               # (TN, C) native dtype
    labels = labels_ref[...]                          # (TN, 1) int32
    tn_, c = x.shape

    # Numerically stable logsumexp per row: max/subtract in native dtype,
    # exp/sum accumulation in f32 (exp goes to the EUP regardless).
    m = jnp.max(x, axis=-1, keepdims=True)            # (TN, 1)
    shifted = (x - m).astype(jnp.float32)
    sumexp = jnp.sum(jnp.exp(shifted), axis=-1, keepdims=True)
    lse = jnp.log(sumexp) + m.astype(jnp.float32)     # (TN, 1) f32

    # Gather the logit at the label index via an iota one-hot mask on the
    # same resident tile (no padded columns exist: block last dim == C).
    col = jax.lax.broadcasted_iota(jnp.int32, (tn_, c), 1)
    onehot = col == labels
    label_logit = jnp.sum(
        jnp.where(onehot, x, jnp.zeros_like(x)), axis=-1, keepdims=True
    ).astype(jnp.float32)

    per_example = lse - label_logit                   # (TN, 1) f32

    # Mask out the ragged tail rows of the last block (static branch: only
    # emitted when N is not a multiple of TN).  Garbage rows from the
    # out-of-bounds part of the last block are forced to 0 here.
    if n_valid % tn != 0:
        row = pl.program_id(0) * tn + jax.lax.broadcasted_iota(
            jnp.int32, (tn_, 1), 0
        )
        per_example = jnp.where(row < n_valid, per_example, 0.0)

    partial = jnp.sum(per_example)                    # scalar f32

    # One unmasked (8, 128) store per block: partial sum in [0, 0], zeros
    # elsewhere; the wrapper sums the whole output slab.
    rr = jax.lax.broadcasted_iota(jnp.int32, (8, 128), 0)
    cc = jax.lax.broadcasted_iota(jnp.int32, (8, 128), 1)
    out_ref[...] = jnp.where((rr == 0) & (cc == 0), partial, 0.0).astype(
        jnp.float32
    )


def crossentropy_loss(pre, label, rep_anchor=None, rep_candidate=None):
    """Matches Crossentropy_Loss.forward: only (pre, label) contribute."""
    n, c = pre.shape
    itemsize = jnp.dtype(pre.dtype).itemsize

    # Packed-sublane multiple for the logits dtype (f32:8, bf16:16, 8-bit:32).
    sub = {4: 8, 2: 16, 1: 32}.get(itemsize, 8)

    # VMEM footprint per logits row uses the lane-padded class count.
    c_lane = pl.cdiv(c, 128) * 128

    # Tile byte target: ~4 MiB everywhere (safe on v7x's 64 MiB physical /
    # 32 MiB scoped VMEM); bump to ~8 MiB when the chip has >=96 MiB VMEM
    # (v5e/v6e) to amortize per-grid-step overhead on large-vocab shapes.
    tile_bytes = 4 * 1024 * 1024
    try:
        if pltpu.get_tpu_info().vmem_capacity_bytes >= 96 * 1024 * 1024:
            tile_bytes = 8 * 1024 * 1024
    except Exception:
        pass

    # Row tile: largest sublane multiple hitting the byte target, but never
    # more than ~half the batch (keeps >= 2 grid blocks -> both v7x cores),
    # and never more than the (rounded-up) batch itself.
    tn = max(sub, (tile_bytes // (c_lane * itemsize)) // sub * sub)
    half = max(sub, pl.cdiv(pl.cdiv(n, 2), sub) * sub)
    tn = int(min(tn, half, pl.cdiv(n, sub) * sub))

    num_blocks = pl.cdiv(n, tn)

    labels2d = label.astype(jnp.int32).reshape(n, 1)

    kernel = functools.partial(_ce_partial_kernel, tn=tn, n_valid=n)

    cost = pl.CostEstimate(
        flops=int(5 * n * c),
        transcendentals=int(n * c),
        bytes_accessed=int(n * c * itemsize + n * 4 + num_blocks * 8 * 128 * 4),
    )

    partials = pl.pallas_call(
        kernel,
        out_shape=jax.ShapeDtypeStruct((num_blocks * 8, 128), jnp.float32),
        grid_spec=pltpu.PrefetchScalarGridSpec(
            num_scalar_prefetch=0,
            grid=(num_blocks,),
            in_specs=[
                # Last block dim == full C: exempt from the 128 rule, no pad.
                pl.BlockSpec((tn, c), lambda i: (i, 0)),
                pl.BlockSpec((tn, 1), lambda i: (i, 0)),
            ],
            out_specs=pl.BlockSpec((8, 128), lambda i: (i, 0)),
        ),
        compiler_params=pltpu.CompilerParams(
            dimension_semantics=("parallel",),
            vmem_limit_bytes=32 * 1024 * 1024,
        ),
        cost_estimate=cost,
    )(pre, labels2d)

    return jnp.sum(partials) / jnp.float32(n)


if __name__ == "__main__":
    key = jax.random.PRNGKey(0)
    k1, k2, k3, k4 = jax.random.split(key, 4)

    N, C, H = 8, 32, 64  # batch, num classes, rep hidden size
    pre = jax.random.normal(k1, (N, C), dtype=jnp.float32)
    label = jax.random.randint(k2, (N,), 0, C, dtype=jnp.int32)
    rep_anchor = jax.random.normal(k3, (N, H), dtype=jnp.float32)      # unused
    rep_candidate = jax.random.normal(k4, (N, H), dtype=jnp.float32)   # unused

    loss = crossentropy_loss(pre, label, rep_anchor, rep_candidate)
    jax.block_until_ready(loss)

    # sanity check against pure-JAX reference (mean CE over batch)
    ref = jnp.mean(
        jax.nn.logsumexp(pre, axis=-1)
        - jnp.take_along_axis(pre, label[:, None], axis=-1)[:, 0]
    )
    assert jnp.allclose(loss, ref, atol=1e-5, rtol=1e-5), (loss, ref)

    print("KERNEL_OK")
</pallas_src>

<mosaic_0001>
module attributes {stable_mosaic.version = 11 : i64} {
  func.func @_ce_partial_kernel(%arg0: i32, %arg1: memref<8x32xf32, #tpu.memory_space<vmem>>, %arg2: memref<8x1xi32, #tpu.memory_space<vmem>>, %arg3: memref<8x128xf32, #tpu.memory_space<vmem>>) attributes {dimension_semantics = [#tpu.dimension_semantics<parallel>], iteration_bounds = array<i64: 1>, scalar_prefetch = 0 : i64, scratch_operands = 0 : i64, tpu.core_type = #tpu.core_type<tc>, window_params = [{transform_indices = @transform_0, window_bounds = array<i64: 8, 32>}, {transform_indices = @transform_1, window_bounds = array<i64: 8, 1>}, {transform_indices = @transform_2, window_bounds = array<i64: 8, 128>}]} {
    %c0 = arith.constant 0 : index
    %c0_0 = arith.constant 0 : index
    %0 = vector.load %arg1[%c0, %c0_0] : memref<8x32xf32, #tpu.memory_space<vmem>>, vector<8x32xf32>
    %c0_1 = arith.constant 0 : index
    %c0_2 = arith.constant 0 : index
    %1 = vector.load %arg2[%c0_1, %c0_2] : memref<8x1xi32, #tpu.memory_space<vmem>>, vector<8x1xi32>
    %cst = arith.constant dense<0xFF800000> : vector<8xf32>
    %2 = vector.multi_reduction <maximumf>, %0, %cst [1] : vector<8x32xf32> to vector<8xf32>
    %3 = vector.shape_cast %2 : vector<8xf32> to vector<8x1xf32>
    %4 = vector.broadcast %3 : vector<8x1xf32> to vector<8x32xf32>
    %5 = arith.subf %0, %4 : vector<8x32xf32>
    %6 = math.exp %5 : vector<8x32xf32>
    %cst_3 = arith.constant dense<0.000000e+00> : vector<8xf32>
    %7 = vector.multi_reduction <add>, %6, %cst_3 [1] : vector<8x32xf32> to vector<8xf32>
    %8 = vector.shape_cast %7 : vector<8xf32> to vector<8x1xf32>
    %9 = math.log %8 : vector<8x1xf32>
    %10 = arith.addf %9, %3 : vector<8x1xf32>
    %11 = tpu.iota {dimensions = array<i32: 1>} : vector<8x32xi32>
    %12 = vector.broadcast %1 : vector<8x1xi32> to vector<8x32xi32>
    %13 = arith.cmpi eq, %11, %12 : vector<8x32xi32>
    %cst_4 = arith.constant 0.000000e+00 : f32
    %14 = vector.broadcast %cst_4 : f32 to vector<8x32xf32>
    %15 = arith.select %13, %0, %14 : vector<8x32xi1>, vector<8x32xf32>
    %cst_5 = arith.constant dense<0.000000e+00> : vector<8xf32>
    %16 = vector.multi_reduction <add>, %15, %cst_5 [1] : vector<8x32xf32> to vector<8xf32>
    %17 = vector.shape_cast %16 : vector<8xf32> to vector<8x1xf32>
    %18 = arith.subf %10, %17 : vector<8x1xf32>
    %19 = vector.shape_cast %18 : vector<8x1xf32> to vector<1x8x1xf32>
    %cst_6 = arith.constant dense<0.000000e+00> : vector<1xf32>
    %20 = vector.multi_reduction <add>, %19, %cst_6 [1, 2] : vector<1x8x1xf32> to vector<1xf32>
    %21 = vector.shape_cast %20 : vector<1xf32> to vector<1x1x1xf32>
    %22 = vector.extract %21[0, 0, 0] : f32 from vector<1x1x1xf32>
    %23 = tpu.iota {dimensions = array<i32: 0>} : vector<8x128xi32>
    %24 = tpu.iota {dimensions = array<i32: 1>} : vector<8x128xi32>
    %c0_i32 = arith.constant 0 : i32
    %25 = vector.broadcast %c0_i32 : i32 to vector<8x128xi32>
    %26 = arith.cmpi eq, %23, %25 : vector<8x128xi32>
    %c0_i32_7 = arith.constant 0 : i32
    %27 = vector.broadcast %c0_i32_7 : i32 to vector<8x128xi32>
    %28 = arith.cmpi eq, %24, %27 : vector<8x128xi32>
    %29 = arith.andi %26, %28 : vector<8x128xi1>
    %cst_8 = arith.constant 0.000000e+00 : f32
    %30 = vector.broadcast %22 : f32 to vector<8x128xf32>
    %31 = vector.broadcast %cst_8 : f32 to vector<8x128xf32>
    %32 = arith.select %29, %30, %31 : vector<8x128xi1>, vector<8x128xf32>
    %c0_9 = arith.constant 0 : index
    %c0_10 = arith.constant 0 : index
    %33 = vector.load %arg3[%c0_9, %c0_10] : memref<8x128xf32, #tpu.memory_space<vmem>>, vector<8x128xf32>
    tpu.vector_store %arg3[%c0_9, %c0_10], %32 {strides = array<i32>} : memref<8x128xf32, #tpu.memory_space<vmem>>, vector<8x128xf32>,
    return
  }
  func.func @transform_0(%arg0: i32) -> (i32, i32) {
    %c0_i32 = arith.constant 0 : i32
    %c0_i32_0 = arith.constant 0 : i32
    return %arg0, %c0_i32 : i32, i32
  }
  func.func @transform_1(%arg0: i32) -> (i32, i32) {
    %c0_i32 = arith.constant 0 : i32
    %c0_i32_0 = arith.constant 0 : i32
    return %arg0, %c0_i32 : i32, i32
  }
  func.func @transform_2(%arg0: i32) -> (i32, i32) {
    %c0_i32 = arith.constant 0 : i32
    %c0_i32_0 = arith.constant 0 : i32
    return %arg0, %c0_i32 : i32, i32
  }
}

</mosaic_0001>

<llo_original>
// kernel: tpu_custom_call.1
$region0: #{tpu_custom_call.1}
  #allocation0 [shape = 'u32[]', space=smem, size = 0x4, offset = 0x4, fixed_abs, tag = 'smem constant byte address 0x4 - core index']
  #allocation1 [shape = 'u32[144,128]{1,0:T(1,128)}', space=vmem, size = 0x12000, scoped, tag = 'internal scratch']
  %s0 = inlined_call_operand.vmem [shape: f32[8,32], index: 0, kind: input, shape index: {}]
  %s1 = inlined_call_operand.vmem [shape: s32[8,1], index: 1, kind: input, shape index: {}]
  %s2 = inlined_call_operand.hbm [shape: f32[8,128], index: 2, kind: output, shape index: {}]
  %s3 = sld [smem:[#allocation0]]
  $region18: #{tpu_custom_call.1} parent=0
    _
  %s5 = ssub.s32 1, %s3
  %s6 = scalar_select 0, %s5, %s3
  $region1: #{tpu_custom_call.1} parent=0
    #allocation2 [shape = 'u8[4096]{0}', space=vmem, size = 0x1000, scoped, tag = 'output window, operand 0, single buffered']
    #allocation3 [shape = 's32[1]{0}', space=sflag, size = 0x4, scoped, tag = 'scoped memory for tpu_custom_call.1']
    %7 = vsyncpa [#allocation3], 0
    // Predicated region
    $region2: #{tpu_custom_call.1} parent=1 // pred_check
      _
    $region3: #{tpu_custom_call.1} parent=1 // pred_check_branch
      %9 = sbr.rel (0) target = $region5
    $region4: #{tpu_custom_call.1} parent=1 // pred_region
      _
    $region5: #{tpu_custom_call.1} parent=1 // pred_fallthru
      _
    // Predicated region
    $region6: #{tpu_custom_call.1} parent=1 // pred_check
      _
    $region7: #{tpu_custom_call.1} parent=1 // pred_check_branch
      %11 = sbr.rel (0) target = $region9
    $region8: #{tpu_custom_call.1} parent=1 // pred_region
      _
    $region9: #{tpu_custom_call.1} parent=1 // pred_fallthru
      _
    %v12 = vld [vmem:[%s0] sm:$0xff]
    %v13 = vld [vmem:[%s1] sm:$0xff]
    %vm14 = vcmask 261120
    %v15 = vsel %vm14, %v12, -inf
    %16 = vmax.xlane.f32.xlu0 %v15
    %v17 = vpop.xlane.xlu0 %16
    %v18 = vsub.f32 %v12, %v17
    %v19 = vmul.f32 %v18, 1.442695
    %v20 = vpow.pop %v19
    %v21 = vsel %vm14, %v20, 0.0
    %22 = vadd.xlane.f32.xlu0 %v21
    %v23 = vpop.xlane.xlu0 %22
    %v24 = vlog2.pop %v23
    %v25 = vmul.f32 %v24, 0.6931472
    %v26 = vadd.f32 %v25, %v17
    %v27 = vlaneseq
    %v28 = vand.u32 %v27, 127
    %29 = vset.pattern.permute.xlu0 0
    %30 = vperm.xlu0 %29, %v13
    %v31 = vpop.permute.xlu0 %30
    %vm32 = vcmp.eq.s32.totalorder %v28, %v31
    %v33 = vsel %vm32, %v12, 0.0
    %v34 = vsel %vm14, %v33, 0.0
    %35 = vadd.xlane.f32.xlu0 %v34
    %v36 = vpop.xlane.xlu0 %35
    %v37 = vsub.f32 %v26, %v36
    %vm38 = vcmask 7168
    %v39 = vsel %vm38, %v37, 0.0
    %40 = vadd.xlane.f32.xlu0 %v39
    %v41 = vpop.xlane.xlu0 %40
    %v42 = vrot.slane %v41, 4
    %v43 = vadd.f32 %v41, %v42
    %v44 = vrot.slane %v43, 2
    %v45 = vadd.f32 %v43, %v44
    %v46 = vrot.slane %v45, 1
    %v47 = vadd.f32 %v45, %v46
    %s48 = vtos %v47
    %v49 = vlaneseq
    %v50 = vshrl.u32 %v49, 7
    %vm51 = vcmp.eq.s32.totalorder %v50, 0
    %vm52 = vcmp.eq.s32.totalorder %v28, 0
    %vm53 = vmand %vm51, %vm52
    %v54 = vstv %s48
    %v55 = vsel %vm53, %v54, 0.0
    %56 = vst [vmem:[#allocation2] sm:$0xff] %v55
    // Predicated region
    $region10: #{tpu_custom_call.1} parent=1 // pred_check
      _
    $region11: #{tpu_custom_call.1} parent=1 // pred_check_branch
      %58 = sbr.rel (0) target = $region13
    $region12: #{tpu_custom_call.1} parent=1 // pred_region
      %s60 = ssub.s32 128, 128
      %61 = vsyncadd [#allocation3], %s60
      %s63 = sshll.u32 [#allocation2], 4
      %s64 = int_to_ptr.vmem [resolvable:$true] %s63
      %66 = dma.vmem_to_hbm [thread:$0]  %s64, 128, %s2, [#allocation3]
    $region13: #{tpu_custom_call.1} parent=1 // pred_fallthru
      _
    // Predicated region
    $region14: #{tpu_custom_call.1} parent=1 // pred_check
      _
    $region15: #{tpu_custom_call.1} parent=1 // pred_check_branch
      %68 = sbr.rel (0) target = $region17
    $region16: #{tpu_custom_call.1} parent=1 // pred_region
      %69 = dma.done [#allocation3], 128
    $region17: #{tpu_custom_call.1} parent=1 // pred_fallthru
      _
    %70 = vsyncpa [#allocation3], 1

</llo_original>
